<compile_context>
chip_gen: v7x
topology: tpu7x:2x2x1
jax: 0.10.0
libtpu: 0.0.40
codegen_flags: <defaults>
</compile_context>

<pallas_src>
import jax
import jax.numpy as jnp
from jax.experimental import pallas as pl
from jax.experimental.pallas import tpu as pltpu


def _round_up(a, b):
    return ((a + b - 1) // b) * b


# ---------------------------------------------------------------------------
# Kernels
# ---------------------------------------------------------------------------
def _kernel_rows(x_ref, w_ref, b_ref, o_ref):
    # Pixels-on-rows: x [TM, Cin] @ w [Cin, TN] + b [1, TN] -> o [TM, TN].
    acc = jnp.dot(x_ref[...], w_ref[...], preferred_element_type=jnp.float32)
    o_ref[...] = (acc + b_ref[...]).astype(o_ref.dtype)


def _kernel_lanes(x_ref, w_ref, b_ref, o_ref):
    # Pixels-on-lanes: w [Cout, Cin] @ x [1, Cin, TP] + b [Cout, 1]
    #   -> o [1, Cout, TP].
    acc = jnp.dot(w_ref[...], x_ref[0], preferred_element_type=jnp.float32)
    o_ref[0] = (acc + b_ref[...]).astype(o_ref.dtype)


# ---------------------------------------------------------------------------
# Pallas call wrappers
# ---------------------------------------------------------------------------
def _conv1x1_rows(x2d, w_io, b_row, *, tile_m):
    """y[P, Cout] = x2d[P, Cin] @ w_io[Cin, Cout] + b_row.

    Used when the NCHW input has H*W == 1, so the rows layout is a pure
    reshape (no wrapper transposes).
    """
    P, Cin = x2d.shape
    Cout = w_io.shape[1]

    # Pixel tile: multiple of 8 (sublane), capped so the double-buffered
    # X/Y tiles (~18 MB at TM=2048, f32) fit every chip's scoped VMEM.
    tm = min(tile_m, _round_up(P, 8))
    num_m = pl.cdiv(P, tm)

    # With a single pixel tile (tiny P) the only parallelism left is Cout:
    # split it into two lane tiles (multiple of 128 each) so both v7x
    # TensorCores each fetch/apply ~half the weight.  On v5e/v6e this is just
    # two cheap sequential grid steps.
    if num_m == 1 and Cout >= 256:
        tn = _round_up(pl.cdiv(Cout, 2), 128)      # 1056 -> 640 (tiles 640/416)
    else:
        tn = Cout
    num_n = pl.cdiv(Cout, tn)

    # Weight/bias block index is constant when Cout is untiled -> a second
    # pipeline buffer is wasted VMEM; single-buffer them in that case.
    wb_mode = pl.Buffered(1) if num_n == 1 else None

    itemsize = x2d.dtype.itemsize
    cost = pl.CostEstimate(
        flops=2 * P * Cin * Cout,
        transcendentals=0,
        bytes_accessed=(P * Cin + Cin * Cout + Cout + P * Cout) * itemsize,
    )

    # NOTE: blocks may extend past the array (P < tm rows; Cout % tn columns
    # when Cout is split).  The padded rows/columns feed unspecified values
    # into the matmul, but each output element depends only on its own X row
    # and W column and Pallas masks the out-of-bounds part of the output
    # store, so all valid elements are exact.  Do not introduce any cross-row
    # or cross-column reduction here without revisiting this.
    return pl.pallas_call(
        _kernel_rows,
        out_shape=jax.ShapeDtypeStruct((P, Cout), x2d.dtype),
        grid_spec=pltpu.PrefetchScalarGridSpec(
            num_scalar_prefetch=0,
            grid=(num_m, num_n),
            in_specs=[
                # X tile marches along the pixel axis.
                pl.BlockSpec((tm, Cin), lambda i, j: (i, 0)),
                # Weight / bias: resident (constant index) or Cout-tiled.
                pl.BlockSpec((Cin, tn), lambda i, j: (0, j),
                             pipeline_mode=wb_mode),
                pl.BlockSpec((1, tn), lambda i, j: (0, j),
                             pipeline_mode=wb_mode),
            ],
            out_specs=pl.BlockSpec((tm, tn), lambda i, j: (i, j)),
        ),
        compiler_params=pltpu.CompilerParams(
            # Both axes produce independent output tiles -> megacore sharding.
            dimension_semantics=("parallel", "parallel"),
            vmem_limit_bytes=40 * 1024 * 1024,
        ),
        cost_estimate=cost,
    )(x2d, w_io, b_row)


def _conv1x1_lanes(x3d, w_oi, b_col, *, tile_p):
    """y3d[n] = w_oi[Cout, Cin] @ x3d[n][Cin, HW] + b_col.

    Used when H*W > 1: keeps the pixel axis on lanes, directly on the NCHW
    reshape, so no NCHW<->NHWC transposes (no extra HBM passes) are emitted.
    """
    N, Cin, HW = x3d.shape
    Cout = w_oi.shape[0]

    # Lane tile over pixels: full extent if small, else a multiple of 128.
    tp = HW if HW <= tile_p else tile_p
    num_p = pl.cdiv(HW, tp)

    itemsize = x3d.dtype.itemsize
    cost = pl.CostEstimate(
        flops=2 * N * HW * Cin * Cout,
        transcendentals=0,
        bytes_accessed=(N * Cin * HW + Cin * Cout + Cout + N * Cout * HW)
        * itemsize,
    )

    return pl.pallas_call(
        _kernel_lanes,
        out_shape=jax.ShapeDtypeStruct((N, Cout, HW), x3d.dtype),
        grid_spec=pltpu.PrefetchScalarGridSpec(
            num_scalar_prefetch=0,
            grid=(N, num_p),
            in_specs=[
                pl.BlockSpec((1, Cin, tp), lambda n, p: (n, 0, p)),
                # Weight / bias are VMEM-resident across the whole grid.
                pl.BlockSpec((Cout, Cin), lambda n, p: (0, 0),
                             pipeline_mode=pl.Buffered(1)),
                pl.BlockSpec((Cout, 1), lambda n, p: (0, 0),
                             pipeline_mode=pl.Buffered(1)),
            ],
            out_specs=pl.BlockSpec((1, Cout, tp), lambda n, p: (n, 0, p)),
        ),
        compiler_params=pltpu.CompilerParams(
            dimension_semantics=("parallel", "parallel"),
            vmem_limit_bytes=40 * 1024 * 1024,
        ),
        cost_estimate=cost,
    )(x3d, w_oi, b_col)


# ---------------------------------------------------------------------------
# Public API: one-time param prep + forward
# ---------------------------------------------------------------------------
def init_conv1x1_params(weight, bias):
    """One-time parameter preparation (call at init time, NOT per forward).

    Pre-lays-out the weight for both kernel paths so the forward call emits no
    transpose (the previous per-call `.T` cost an extra full weight HBM pass).
    weight: [Cout, Cin, 1, 1], bias: [Cout].
    """
    Cout, Cin = int(weight.shape[0]), int(weight.shape[1])
    w_oi = jnp.asarray(weight).reshape(Cout, Cin)        # [Cout, Cin]
    b = jnp.asarray(bias).reshape(Cout)
    return {
        "w_io": jnp.transpose(w_oi),                     # [Cin, Cout]
        "w_oi": w_oi,                                    # [Cout, Cin]
        "b_row": b.reshape(1, Cout),                     # for rows path
        "b_col": b.reshape(Cout, 1),                     # for lanes path
    }


def conv2d_1x1(x, params, *, tile_m=2048, tile_p=2048):
    """1x1 Conv2d forward.  x: [N, Cin, H, W] NCHW.  Returns [N, Cout, H, W]."""
    N, Cin, H, W = x.shape
    Cout = params["w_io"].shape[1]

    if H * W == 1:
        # Pixels-on-rows (pure reshape): X[N, Cin] @ W[Cin, Cout] + b.
        y2d = _conv1x1_rows(x.reshape(N, Cin), params["w_io"],
                            params["b_row"], tile_m=tile_m)
        return y2d.reshape(N, Cout, H, W)

    # Pixels-on-lanes (pure reshapes, no transposes):
    # Y[n] = W[Cout, Cin] @ X[n][Cin, H*W] + b.
    y3d = _conv1x1_lanes(x.reshape(N, Cin, H * W), params["w_oi"],
                         params["b_col"], tile_p=tile_p)
    return y3d.reshape(N, Cout, H, W)


if __name__ == "__main__":
    key = jax.random.PRNGKey(0)
    k_x, k_w, k_b, k_x2 = jax.random.split(key, 4)

    # Shapes implied by the PyTorch module's forward: x233 = [1, 44, 1, 1].
    N, Cin, H, W = 1, 44, 1, 1
    Cout = 1056

    x = jax.random.normal(k_x, (N, Cin, H, W), dtype=jnp.float32)
    # PyTorch Conv2d default init bound.
    bound = 1.0 / jnp.sqrt(Cin * 1 * 1)
    weight = jax.random.uniform(k_w, (Cout, Cin, 1, 1), jnp.float32,
                                minval=-bound, maxval=bound)
    bias = jax.random.uniform(k_b, (Cout,), jnp.float32,
                              minval=-bound, maxval=bound)

    # One-time parameter prep (outside the per-call hot path).
    params = init_conv1x1_params(weight, bias)

    def ref_conv(x_):
        return (jnp.einsum("nchw,oc->nohw", x_, weight.reshape(Cout, Cin))
                + bias.reshape(1, Cout, 1, 1))

    # Benchmarked shape (H*W == 1 -> pixels-on-rows path, Cout split for v7x).
    y = conv2d_1x1(x, params)
    jax.block_until_ready(y)
    assert y.shape == (N, Cout, H, W), y.shape
    assert jnp.allclose(y, ref_conv(x), atol=1e-5, rtol=1e-5)

    # Small H*W > 1 check for the transpose-free pixels-on-lanes path.
    x2 = jax.random.normal(k_x2, (2, Cin, 4, 4), dtype=jnp.float32)
    y2 = conv2d_1x1(x2, params)
    jax.block_until_ready(y2)
    assert y2.shape == (2, Cout, 4, 4), y2.shape
    assert jnp.allclose(y2, ref_conv(x2), atol=1e-5, rtol=1e-5)

    print("KERNEL_OK")
</pallas_src>

<mosaic_0001>
module attributes {stable_mosaic.version = 11 : i64} {
  func.func @_kernel_rows(%arg0: i32, %arg1: i32, %arg2: memref<8x44xf32, #tpu.memory_space<vmem>>, %arg3: memref<44x640xf32, #tpu.memory_space<vmem>>, %arg4: memref<1x640xf32, #tpu.memory_space<vmem>>, %arg5: memref<8x640xf32, #tpu.memory_space<vmem>>) attributes {dimension_semantics = [#tpu.dimension_semantics<parallel>, #tpu.dimension_semantics<parallel>], iteration_bounds = array<i64: 1, 2>, scalar_prefetch = 0 : i64, scratch_operands = 0 : i64, tpu.core_type = #tpu.core_type<tc>, window_params = [{transform_indices = @transform_0, window_bounds = array<i64: 8, 44>}, {transform_indices = @transform_1, window_bounds = array<i64: 44, 640>}, {transform_indices = @transform_2, window_bounds = array<i64: 1, 640>}, {transform_indices = @transform_3, window_bounds = array<i64: 8, 640>}]} {
    %c0 = arith.constant 0 : index
    %c0_0 = arith.constant 0 : index
    %0 = vector.load %arg2[%c0, %c0_0] : memref<8x44xf32, #tpu.memory_space<vmem>>, vector<8x44xf32>
    %c0_1 = arith.constant 0 : index
    %c0_2 = arith.constant 0 : index
    %1 = vector.load %arg3[%c0_1, %c0_2] : memref<44x640xf32, #tpu.memory_space<vmem>>, vector<44x640xf32>
    %cst = arith.constant dense<0.000000e+00> : vector<8x640xf32>
    %2 = tpu.matmul %0, %1, %cst {dimension_numbers = #tpu.dot_dimension_numbers<[1], [0], [0], [1], [0, 0, 1, 1], [], []>} : vector<8x44xf32>, vector<44x640xf32>, vector<8x640xf32> -> vector<8x640xf32>
    %c0_3 = arith.constant 0 : index
    %c0_4 = arith.constant 0 : index
    %3 = vector.load %arg4[%c0_3, %c0_4] : memref<1x640xf32, #tpu.memory_space<vmem>>, vector<1x640xf32>
    %4 = vector.broadcast %3 : vector<1x640xf32> to vector<8x640xf32>
    %5 = arith.addf %2, %4 : vector<8x640xf32>
    %c0_5 = arith.constant 0 : index
    %c0_6 = arith.constant 0 : index
    %6 = vector.load %arg5[%c0_5, %c0_6] : memref<8x640xf32, #tpu.memory_space<vmem>>, vector<8x640xf32>
    tpu.vector_store %arg5[%c0_5, %c0_6], %5 {strides = array<i32>} : memref<8x640xf32, #tpu.memory_space<vmem>>, vector<8x640xf32>,
    return
  }
  func.func @transform_0(%arg0: i32, %arg1: i32) -> (i32, i32) {
    %c0_i32 = arith.constant 0 : i32
    %c0_i32_0 = arith.constant 0 : i32
    return %arg0, %c0_i32 : i32, i32
  }
  func.func @transform_1(%arg0: i32, %arg1: i32) -> (i32, i32) {
    %c0_i32 = arith.constant 0 : i32
    %c0_i32_0 = arith.constant 0 : i32
    return %c0_i32, %arg1 : i32, i32
  }
  func.func @transform_2(%arg0: i32, %arg1: i32) -> (i32, i32) {
    %c0_i32 = arith.constant 0 : i32
    %c0_i32_0 = arith.constant 0 : i32
    return %c0_i32, %arg1 : i32, i32
  }
  func.func @transform_3(%arg0: i32, %arg1: i32) -> (i32, i32) {
    %c0_i32 = arith.constant 0 : i32
    return %arg0, %arg1 : i32, i32
  }
}

</mosaic_0001>

<llo_original>
// kernel: tpu_custom_call.1
$region0: #{tpu_custom_call.1}
  #allocation0 [shape = 'u32[]', space=smem, size = 0x4, offset = 0x4, fixed_abs, tag = 'smem constant byte address 0x4 - core index']
  #allocation1 [shape = 'u32[144,128]{1,0:T(1,128)}', space=vmem, size = 0x12000, scoped, tag = 'internal scratch']
  %s0 = inlined_call_operand.hbm [shape: f32[1,44], index: 0, kind: input, shape index: {}]
  %s1 = inlined_call_operand.hbm [shape: f32[44,1056], index: 1, kind: input, shape index: {}]
  %s2 = inlined_call_operand.hbm [shape: f32[1,1056], index: 2, kind: input, shape index: {}]
  %s3 = inlined_call_operand.hbm [shape: f32[1,1056], index: 3, kind: output, shape index: {}]
  %s4 = sld [smem:[#allocation0]]
  $region57: #{tpu_custom_call.1} parent=0
    _
  %s6 = ssub.s32 1, %s4
  %s7 = scalar_select 0, %s6, %s4
  $region1: #{tpu_custom_call.1} parent=0
    #allocation2 [shape = 'u8[4096]{0}', space=vmem, size = 0x1000, scoped, tag = 'input window, operand 0, single buffered']
    #allocation3 [shape = 's32[2]{0}', space=sflag, size = 0x8, scoped, tag = 'scoped memory for tpu_custom_call.1']
    #allocation4 [shape = 's32[2]{0}', space=sflag, size = 0x8, scoped, tag = 'scoped memory for tpu_custom_call.1']
    #allocation5 [shape = 'u8[245760]{0}', space=vmem, size = 0x3c000, scoped, tag = 'input window, operand 1']
    #allocation6 [shape = 's32[2]{0}', space=sflag, size = 0x8, scoped, tag = 'scoped memory for tpu_custom_call.1']
    #allocation7 [shape = 'u8[5120]{0}', space=vmem, size = 0x1400, scoped, tag = 'input window, operand 2']
    #allocation8 [shape = 'u8[40960]{0}', space=vmem, size = 0xa000, scoped, tag = 'output window, operand 0']
    %8 = vsyncpa [#allocation3], 0
    %9 = vsyncpa [#allocation6], 0
    %s10 = scalar_lea.sflag [#allocation6], 1
    %11 = vsyncpa %s10, 0
    %12 = vsyncpa [#allocation4], 0
    %s13 = scalar_lea.sflag [#allocation4], 1
    %14 = vsyncpa %s13, 0
    loop: start=0, step=1, limit=4
    $region2: #{tpu_custom_call.1} parent=1 // loop_pre_header
      _
    $region3: #{tpu_custom_call.1} parent=1 // loop_header
      %s16 = sphi 0, %s20
      %p17 = scmp.ge.s32.totalorder %s16, 4
      %s23 = sphi 0, %s35
      %s24 = sphi 0, %s31
      %s25 = sphi 0, %s23
      %s26 = sphi 0, %s24
      %s27 = sphi 0, %s25
      %s28 = sphi 0, %s26
      %s38 = sphi 0, %s40
      %s41 = sphi 0, %s38
      %s42 = sphi 0, %s41
      %s58 = sphi 0, %s42
      %s64 = sphi 0, %s66
      %s67 = sphi 0, %s64
      %s68 = sphi 0, %s67
      %s84 = sphi 0, %s68
      %s90 = sphi 0, %s92
      %s93 = sphi 0, %s90
      %s94 = sphi 0, %s93
      %s110 = sphi 0, %s94
      %s118 = sphi 0, %s120
      %s121 = sphi 0, %s118
      %s122 = sphi 0, %s121
      %s138 = sphi 0, %s122
    $region4: #{tpu_custom_call.1} parent=1 // loop_header_branch
      %19 = sbr.rel (%p17) target = $region8
    $region5: #{tpu_custom_call.1} parent=1 // loop_body
      %s21 = ssub.s32 %s16, 1
      %s22 = ssub.s32 %s16, 2
      %s29 = sadd.s32 1, %s24
      %p30 = scmp.ge.s32.totalorder %s29, 2
      %s31 = scalar_select %p30, 0, %s29
      %s32 = sadd.s32 1, %s23
      %s33 = scalar_select %p30, %s32, %s23
      %p34 = scmp.ge.s32.totalorder %s33, 1
      %s35 = scalar_select %p34, 0, %s33
      %s36 = ssub.s32 %s23, %s35
      %p37 = scmp.eq.s32.totalorder %s36, 0
      %s39 = sadd.s32 %s38, 1
      %s40 = scalar_select %p37, %s38, %s39
      %p43 = pneg %p37
      %p44 = scmp.eq.s32.totalorder %s16, 1
      %p45 = por %p43, %p44
      %p46 = scmp.ne.s32.totalorder %s38, %s41
      %p47 = scmp.eq.s32.totalorder %s16, 0
      %p48 = por %p46, %p47
      %p49 = scmp.ne.s32.totalorder %s38, %s41
      %p50 = scmp.eq.s32.totalorder %s21, 1
      %p51 = por %p49, %p50
      %p52 = scmp.ne.s32.totalorder %s41, %s42
      %p53 = scmp.eq.s32.totalorder %s21, 0
      %p54 = por %p52, %p53
      %p55 = scmp.ne.s32.totalorder %s41, %s42
      %p56 = scmp.eq.s32.totalorder %s22, 1
      %p57 = por %p55, %p56
      %p59 = scmp.ne.s32.totalorder %s42, %s58
      %p60 = scmp.eq.s32.totalorder %s22, 0
      %p61 = por %p59, %p60
      %s62 = ssub.s32 %s24, %s31
      %p63 = scmp.eq.s32.totalorder %s62, 0
      %s65 = sadd.s32 %s64, 1
      %s66 = scalar_select %p63, %s64, %s65
      %p69 = pneg %p63
      %p70 = scmp.eq.s32.totalorder %s16, 1
      %p71 = por %p69, %p70
      %p72 = scmp.ne.s32.totalorder %s64, %s67
      %p73 = scmp.eq.s32.totalorder %s16, 0
      %p74 = por %p72, %p73
      %p75 = scmp.ne.s32.totalorder %s64, %s67
      %p76 = scmp.eq.s32.totalorder %s21, 1
      %p77 = por %p75, %p76
      %p78 = scmp.ne.s32.totalorder %s67, %s68
      %p79 = scmp.eq.s32.totalorder %s21, 0
      %p80 = por %p78, %p79
      %p81 = scmp.ne.s32.totalorder %s67, %s68
      %p82 = scmp.eq.s32.totalorder %s22, 1
      %p83 = por %p81, %p82
      %p85 = scmp.ne.s32.totalorder %s68, %s84
      %p86 = scmp.eq.s32.totalorder %s22, 0
      %p87 = por %p85, %p86
      %s88 = ssub.s32 %s24, %s31
      %p89 = scmp.eq.s32.totalorder %s88, 0
      %s91 = sadd.s32 %s90, 1
      %s92 = scalar_select %p89, %s90, %s91
      %p95 = pneg %p89
      %p96 = scmp.eq.s32.totalorder %s16, 1
      %p97 = por %p95, %p96
      %p98 = scmp.ne.s32.totalorder %s90, %s93
      %p99 = scmp.eq.s32.totalorder %s16, 0
      %p100 = por %p98, %p99
      %p101 = scmp.ne.s32.totalorder %s90, %s93
      %p102 = scmp.eq.s32.totalorder %s21, 1
      %p103 = por %p101, %p102
      %p104 = scmp.ne.s32.totalorder %s93, %s94
      %p105 = scmp.eq.s32.totalorder %s21, 0
      %p106 = por %p104, %p105
      %p107 = scmp.ne.s32.totalorder %s93, %s94
      %p108 = scmp.eq.s32.totalorder %s22, 1
      %p109 = por %p107, %p108
      %p111 = scmp.ne.s32.totalorder %s94, %s110
      %p112 = scmp.eq.s32.totalorder %s22, 0
      %p113 = por %p111, %p112
      %s114 = ssub.s32 %s23, %s35
      %s115 = ssub.s32 %s24, %s31
      %s116 = sor.u32 %s114, %s115
      %p117 = scmp.eq.s32.totalorder %s116, 0
      %s119 = sadd.s32 %s118, 1
      %s120 = scalar_select %p117, %s118, %s119
      %p123 = pneg %p117
      %p124 = scmp.eq.s32.totalorder %s16, 1
      %p125 = por %p123, %p124
      %p126 = scmp.ne.s32.totalorder %s118, %s121
      %p127 = scmp.eq.s32.totalorder %s16, 0
      %p128 = por %p126, %p127
      %p129 = scmp.ne.s32.totalorder %s118, %s121
      %p130 = scmp.eq.s32.totalorder %s21, 1
      %p131 = por %p129, %p130
      %p132 = scmp.ne.s32.totalorder %s121, %s122
      %p133 = scmp.eq.s32.totalorder %s21, 0
      %p134 = por %p132, %p133
      %p135 = scmp.ne.s32.totalorder %s121, %s122
      %p136 = scmp.eq.s32.totalorder %s22, 1
      %p137 = por %p135, %p136
      %p139 = scmp.ne.s32.totalorder %s122, %s138
      %p140 = scmp.eq.s32.totalorder %s22, 0
      %p141 = por %p139, %p140
      %p142 = scmp.le.s32.totalorder 1, %s16
      %p143 = scmp.lt.s32.totalorder %s16, 3
      %p144 = pnand %p142, %p143
      %p145 = pneg %p144
      // Predicated region
      $region9: #{tpu_custom_call.1} parent=5 // pred_check
        _
      $region10: #{tpu_custom_call.1} parent=5 // pred_check_branch
        %147 = sbr.rel (%p144) target = $region12
      $region11: #{tpu_custom_call.1} parent=5 // pred_region
        %s148 = ssub.s32 %s16, 1
        // Predicated region
        $region13: #{tpu_custom_call.1} parent=11 // pred_check
          %p149 = pneg %p54
        $region14: #{tpu_custom_call.1} parent=11 // pred_check_branch
          %151 = sbr.rel (%p149) target = $region16
        $region15: #{tpu_custom_call.1} parent=11 // pred_region
          %s152 = smul.u32 8, %s25
          %s153 = ssub.s32 1, %s152
          %s154 = smul.u32 16, %s153
          %s156 = ssub.s32 128, %s154
          %157 = vsyncadd [#allocation3], %s156
          %p158 = scmp.ne.s32.totalorder 0, %s154
          %s159 = smul.addr %s152, 16
          %s160 = scalar_lea.hbm %s0, %s159
          %s161 = sshll.u32 [#allocation2], 4
          %s162 = int_to_ptr.vmem [resolvable:$true] %s161
          %s163 = sshll.u32 %s153, 4
          %167 = dma.hbm_to_vmem [thread:$0]  (%p158), %s160, %s163, %s162, [#allocation3], 16, 16, 1
        $region16: #{tpu_custom_call.1} parent=11 // pred_fallthru
          _
      $region12: #{tpu_custom_call.1} parent=5 // pred_fallthru
        _
      %p168 = scmp.lt.s32.totalorder %s16, 2
      // Predicated region
      $region17: #{tpu_custom_call.1} parent=5 // pred_check
        %p169 = pneg %p168
      $region18: #{tpu_custom_call.1} parent=5 // pred_check_branch
        %171 = sbr.rel (%p169) target = $region20
      $region19: #{tpu_custom_call.1} parent=5 // pred_region
        // Predicated region
        $region21: #{tpu_custom_call.1} parent=19 // pred_check
          %p172 = pneg %p74
        $region22: #{tpu_custom_call.1} parent=19 // pred_check_branch
          %174 = sbr.rel (%p172) target = $region24
        $region23: #{tpu_custom_call.1} parent=19 // pred_region
          %s175 = sand.u32 %s16, 1
          %s176 = scalar_lea.sflag [#allocation6], %s175
          %s177 = sand.u32 %s64, 1
          %s178 = smul.addr %s177, 240
          %s179 = scalar_lea.vmem [#allocation5], %s178
          %s180 = smul.u32 5, %s24
          %s181 = ssub.s32 9, %s180
          %p182 = scmp.lt.s32.totalorder %s181, 5
          %s183 = scalar_select %p182, %s181, 5
          %s184 = smul.u32 768, %s183
          %s186 = ssub.s32 3840, %s184
          %187 = vsyncadd %s176, %s186
          %p188 = scmp.ne.s32.totalorder 0, %s184
          %s189 = smul.addr %s180, 128
          %s190 = scalar_lea.hbm %s1, %s189
          %s191 = smul.u32 %s183, 8
          %s192 = smul.u32 %s191, 6
          %s193 = sshll.u32 %s179, 4
          %s194 = int_to_ptr.vmem [resolvable:$true] %s193
          %s195 = sshll.u32 %s192, 4
          %199 = dma.hbm_to_vmem [thread:$0]  (%p188), %s190, %s195, %s194, %s176, 1152, 640, %s191
        $region24: #{tpu_custom_call.1} parent=19 // pred_fallthru
          _
        // Predicated region
        $region25: #{tpu_custom_call.1} parent=19 // pred_check
          %p200 = pneg %p100
        $region26: #{tpu_custom_call.1} parent=19 // pred_check_branch
          %202 = sbr.rel (%p200) target = $region28
        $region27: #{tpu_custom_call.1} parent=19 // pred_region
          %s203 = sand.u32 %s16, 1
          %s204 = scalar_lea.sflag [#allocation6], %s203
          %s205 = sand.u32 %s90, 1
          %s206 = smul.addr %s205, 5
          %s207 = scalar_lea.vmem [#allocation7], %s206
          %s208 = smul.u32 5, %s24
          %s209 = ssub.s32 9, %s208
          %p210 = scmp.lt.s32.totalorder %s209, 5
          %s211 = scalar_select %p210, %s209, 5
          %s212 = smul.u32 16, %s211
          %s214 = ssub.s32 80, %s212
          %215 = vsyncadd %s204, %s214
          %p216 = scmp.ne.s32.totalorder 0, %s212
          %s217 = smul.addr %s208, 16
          %s218 = scalar_lea.hbm %s2, %s217
          %s219 = sshll.u32 %s211, 4
          %s220 = sshll.u32 %s207, 4
          %s221 = int_to_ptr.vmem [resolvable:$true] %s220
          %223 = dma.hbm_to_vmem [thread:$0]  (%p216), %s218, %s219, %s221, %s204
        $region28: #{tpu_custom_call.1} parent=19 // pred_fallthru
          _
      $region20: #{tpu_custom_call.1} parent=5 // pred_fallthru
        _
      %p224 = scmp.le.s32.totalorder 1, %s16
      %p225 = scmp.lt.s32.totalorder %s16, 3
      %p226 = pnand %p224, %p225
      %p227 = pneg %p226
      // Predicated region
      $region29: #{tpu_custom_call.1} parent=5 // pred_check
        _
      $region30: #{tpu_custom_call.1} parent=5 // pred_check_branch
        %229 = sbr.rel (%p226) target = $region32
      $region31: #{tpu_custom_call.1} parent=5 // pred_region
        %s230 = ssub.s32 %s16, 1
        // Predicated region
        $region33: #{tpu_custom_call.1} parent=31 // pred_check
          %p231 = pneg %p54
        $region34: #{tpu_custom_call.1} parent=31 // pred_check_branch
          %233 = sbr.rel (%p231) target = $region36
        $region35: #{tpu_custom_call.1} parent=31 // pred_region
          %234 = dma.done [#allocation3], 128
        $region36: #{tpu_custom_call.1} parent=31 // pred_fallthru
          _
        %s235 = sand.u32 %s21, 1
        %s236 = scalar_lea.sflag [#allocation6], %s235
        %s237 = sand.u32 %s67, 1
        %s238 = smul.addr %s237, 240
        %s239 = scalar_lea.vmem [#allocation5], %s238
        // Predicated region
        $region37: #{tpu_custom_call.1} parent=31 // pred_check
          %p240 = pneg %p80
        $region38: #{tpu_custom_call.1} parent=31 // pred_check_branch
          %242 = sbr.rel (%p240) target = $region40
        $region39: #{tpu_custom_call.1} parent=31 // pred_region
          %243 = dma.done %s236, 3840
        $region40: #{tpu_custom_call.1} parent=31 // pred_fallthru
          _
        %s244 = sand.u32 %s21, 1
        %s245 = scalar_lea.sflag [#allocation6], %s244
        %s246 = sand.u32 %s93, 1
        %s247 = smul.addr %s246, 5
        %s248 = scalar_lea.vmem [#allocation7], %s247
        // Predicated region
        $region41: #{tpu_custom_call.1} parent=31 // pred_check
          %p249 = pneg %p106
        $region42: #{tpu_custom_call.1} parent=31 // pred_check_branch
          %251 = sbr.rel (%p249) target = $region44
        $region43: #{tpu_custom_call.1} parent=31 // pred_region
          %252 = dma.done %s245, 80
        $region44: #{tpu_custom_call.1} parent=31 // pred_fallthru
          _
        %p253 = pneg %p54
        %p254 = pneg %p51
        %s255 = sand.u32 %s21, 1
        %s256 = scalar_lea.sflag [#allocation6], %s255
        %s257 = sand.u32 %s67, 1
        %s258 = smul.addr %s257, 240
        %s259 = scalar_lea.vmem [#allocation5], %s258
        %p260 = pneg %p80
        %p261 = pneg %p77
        %s262 = sand.u32 %s21, 1
        %s263 = scalar_lea.sflag [#allocation6], %s262
        %s264 = sand.u32 %s93, 1
        %s265 = smul.addr %s264, 5
        %s266 = scalar_lea.vmem [#allocation7], %s265
        %p267 = pneg %p106
        %p268 = pneg %p103
        %p269 = pneg %p134
        %p270 = pneg %p131
        %s271 = sand.u32 %s121, 1
        %s272 = scalar_lea.sflag [#allocation4], %s271
        %s273 = sand.u32 %s121, 1
        %s274 = smul.addr %s273, 40
        %s275 = scalar_lea.vmem [#allocation8], %s274
        %s276 = smul.u32 8, %s25
        %s277 = ssub.s32 1, %s276
        %s278 = smul.u32 16, %s277
        %s279 = smul.u32 5, %s26
        %s280 = ssub.s32 9, %s279
        %p281 = scmp.lt.s32.totalorder %s280, 5
        %s282 = scalar_select %p281, %s280, 5
        %s283 = smul.u32 768, %s282
        %s284 = smul.u32 5, %s26
        %s285 = ssub.s32 9, %s284
        %p286 = scmp.lt.s32.totalorder %s285, 5
        %s287 = scalar_select %p286, %s285, 5
        %s288 = smul.u32 16, %s287
        %s289 = smul.u32 8, %s25
        %s290 = smul.u32 5, %s26
        %s291 = ssub.s32 1, %s289
        %s292 = smul.u32 16, %s291
        %s293 = ssub.s32 9, %s290
        %p294 = scmp.lt.s32.totalorder %s293, 5
        %s295 = scalar_select %p294, %s293, 5
        %s296 = smul.u32 %s292, %s295
        %v297 = vld [vmem:[#allocation2] sm:$0xff]
        %v298 = vld [vmem:[%s239] sm:$0xff]
        %v299 = vld [vmem:[%s239 + $0x8] sm:$0xff]
        %v300 = vld [vmem:[%s239 + $0x10] sm:$0xff]
        %v301 = vld [vmem:[%s239 + $0x18] sm:$0xff]
        %v302 = vld [vmem:[%s239 + $0x20] sm:$0xff]
        %v303 = vld [vmem:[%s239 + $0x28] sm:$0xff]
        %v304 = vld [vmem:[%s239 + $0x30] sm:$0xff]
        %v305 = vld [vmem:[%s239 + $0x38] sm:$0xff]
        %v306 = vld [vmem:[%s239 + $0x40] sm:$0xff]
        %v307 = vld [vmem:[%s239 + $0x48] sm:$0xff]
        %v308 = vld [vmem:[%s239 + $0x50] sm:$0xff]
        %v309 = vld [vmem:[%s239 + $0x58] sm:$0xff]
        %v310 = vld [vmem:[%s239 + $0x60] sm:$0xff]
        %v311 = vld [vmem:[%s239 + $0x68] sm:$0xff]
        %v312 = vld [vmem:[%s239 + $0x70] sm:$0xff]
        %v313 = vld [vmem:[%s239 + $0x78] sm:$0xff]
        %v314 = vld [vmem:[%s239 + $0x80] sm:$0xff]
        %v315 = vld [vmem:[%s239 + $0x88] sm:$0xff]
        %v316 = vld [vmem:[%s239 + $0x90] sm:$0xff]
        %v317 = vld [vmem:[%s239 + $0x98] sm:$0xff]
        %v318 = vld [vmem:[%s239 + $0xa0] sm:$0xff]
        %v319 = vld [vmem:[%s239 + $0xa8] sm:$0xff]
        %v320 = vld [vmem:[%s239 + $0xb0] sm:$0xff]
        %v321 = vld [vmem:[%s239 + $0xb8] sm:$0xff]
        %v322 = vld [vmem:[%s239 + $0xc0] sm:$0xff]
        %v323 = vld [vmem:[%s239 + $0xc8] sm:$0xf]
        %v324 = vld [vmem:[%s239 + $0xd0] sm:$0xf]
        %v325 = vld [vmem:[%s239 + $0xd8] sm:$0xf]
        %v326 = vld [vmem:[%s239 + $0xe0] sm:$0xf]
        %v327 = vld [vmem:[%s239 + $0xe8] sm:$0xf]
        %v328 = vld [vmem:[%s248] sm:$0x1f]
        %v330 = vlaneseq
        %v331 = vshrl.u32 %v330, 7
        %v332 = vsub.s32 0, %v331
        %v333 = vrot.slane %v328, %v332
        %v334 = vlaneseq
        %v335 = vshrl.u32 %v334, 7
        %v336 = vsub.s32 1, %v335
        %v337 = vrot.slane %v328, %v336
        %v338 = vlaneseq
        %v339 = vshrl.u32 %v338, 7
        %v340 = vsub.s32 2, %v339
        %v341 = vrot.slane %v328, %v340
        %v342 = vlaneseq
        %v343 = vshrl.u32 %v342, 7
        %v344 = vsub.s32 3, %v343
        %v345 = vrot.slane %v328, %v344
        %v346 = vlaneseq
        %v347 = vshrl.u32 %v346, 7
        %v348 = vsub.s32 4, %v347
        %v349 = vrot.slane %v328, %v348
        %vm355 = vcmask 359424
        %v357 = vsel %vm355, %v297, 0
        %vm359 = vcmask 1043456
        %v361 = vsel %vm359, %v323, 0
        %v364 = vsel %vm359, %v324, 0
        %v367 = vsel %vm359, %v325, 0
        %v370 = vsel %vm359, %v326, 0
        %v373 = vsel %vm359, %v327, 0
        %375 = vmatprep.subr.mxu0 %v299
        %376 = vmatpush1.msra.mxu0 %v298
        %377 = vmatprep.subr.mxu0 %v304
        %378 = vmatpush1.msra.mxu0 %v303
        %379 = vmatprep.subr.mxu0 %v309
        %380 = vmatpush1.msra.mxu0 %v308
        %381 = vmatprep.subr.mxu0 %v314
        %382 = vmatpush1.msra.mxu0 %v313
        %383 = vmatprep.subr.mxu0 %v319
        %384 = vmatpush1.msra.mxu0 %v318
        %385 = vmatprep.subr.mxu0 %v364
        %386 = vmatpush1.msra.mxu0 %v361
        %387 = vmatprep.subr.mxu0 0.0
        %388 = vmatpush1.msra.mxu0 0.0
        %389 = vmatprep.subr.mxu0 0.0
        %390 = vmatpush1.msra.mxu0 0.0
        %391 = vmatprep.subr.mxu0 0.0
        %392 = vmatpush1.msra.mxu0 0.0
        %393 = vmatprep.subr.mxu0 0.0
        %394 = vmatpush1.msra.mxu0 0.0
        %395 = vmatprep.subr.mxu0 0.0
        %396 = vmatpush1.msra.mxu0 0.0
        %397 = vmatprep.subr.mxu0 0.0
        %398 = vmatpush1.msra.mxu0 0.0
        %399 = vmatprep.subr.mxu0 0.0
        %400 = vmatpush1.msra.mxu0 0.0
        %401 = vmatprep.subr.mxu0 0.0
        %402 = vmatpush1.msra.mxu0 0.0
        %403 = vmatprep.subr.mxu0 0.0
        %404 = vmatpush1.msra.mxu0 0.0
        %405 = vmatprep.subr.mxu0 0.0
        %406 = vmatpush1.msra.mxu0 0.0
        %407 = vmatprep.subr.mxu0 0.0
        %408 = vmatpush1.msra.mxu0 0.0
        %409 = vmatprep.subr.mxu0 0.0
        %410 = vmatpush1.msra.mxu0 0.0
        %411 = vmatprep.subr.mxu0 0.0
        %412 = vmatpush1.msra.mxu0 0.0
        %413 = vmatprep.subr.mxu0 0.0
        %414 = vmatpush1.msra.mxu0 0.0
        %415 = vmatprep.subr.mxu0 0.0
        %416 = vmatpush1.msra.mxu0 0.0
        %417 = vmatprep.subr.mxu0 0.0
        %418 = vmatpush1.msra.mxu0 0.0
        %419 = vmatprep.subr.mxu0 0.0
        %420 = vmatpush1.msra.mxu0 0.0
        %421 = vmatprep.subr.mxu0 0.0
        %422 = vmatpush1.msra.mxu0 0.0
        %423 = vmatprep.subr.mxu0 0.0
        %424 = vmatpush1.msra.mxu0 0.0
        %425 = vmatprep.subr.mxu0 0.0
        %426 = vmatpush1.msra.mxu0 0.0
        %427 = vmatprep.subr.mxu0 0.0
        %428 = vmatpush1.msra.mxu0 0.0
        %429 = vmatprep.subr.mxu0 0.0
        %430 = vmatpush1.msra.mxu0 0.0
        %431 = vmatprep.subr.mxu0 0.0
        %432 = vmatpush1.msra.mxu0 0.0
        %433 = vmatprep.subr.mxu0 0.0
        %434 = vmatpush1.msra.mxu0 0.0
        %435 = vmatprep.subr.mxu0 0.0
        %436 = vmatpush1.msra.mxu0 0.0
        %437 = vmatprep.subr.mxu0 0.0
        %438 = vmatpush1.msra.mxu0 0.0
        %439 = vmatprep.mubr.f32.mxu0 0.0
        %440 = vmatmul.mubr.f32.gmra.mrb[0].mxu0 %v357
        %v441 = vpop.f32.mrb[0].mxu0
        %v442 = vadd.f32 %v333, %v441
        %v443 = vpop.f32.mrb[0].mxu0
        %v444 = vadd.f32 %v337, %v443
        %445 = vdwg.mxu0
        %446 = vmatprep.subr.mxu0 %v301
        %447 = vmatpush1.msra.mxu0 %v300
        %448 = vmatprep.subr.mxu0 %v306
        %449 = vmatpush1.msra.mxu0 %v305
        %450 = vmatprep.subr.mxu0 %v311
        %451 = vmatpush1.msra.mxu0 %v310
        %452 = vmatprep.subr.mxu0 %v316
        %453 = vmatpush1.msra.mxu0 %v315
        %454 = vmatprep.subr.mxu0 %v321
        %455 = vmatpush1.msra.mxu0 %v320
        %456 = vmatprep.subr.mxu0 %v370
        %457 = vmatpush1.msra.mxu0 %v367
        %458 = vmatprep.subr.mxu0 0.0
        %459 = vmatpush1.msra.mxu0 0.0
        %460 = vmatprep.subr.mxu0 0.0
        %461 = vmatpush1.msra.mxu0 0.0
        %462 = vmatprep.subr.mxu0 0.0
        %463 = vmatpush1.msra.mxu0 0.0
        %464 = vmatprep.subr.mxu0 0.0
        %465 = vmatpush1.msra.mxu0 0.0
        %466 = vmatprep.subr.mxu0 0.0
        %467 = vmatpush1.msra.mxu0 0.0
        %468 = vmatprep.subr.mxu0 0.0
        %469 = vmatpush1.msra.mxu0 0.0
        %470 = vmatprep.subr.mxu0 0.0
        %471 = vmatpush1.msra.mxu0 0.0
        %472 = vmatprep.subr.mxu0 0.0
        %473 = vmatpush1.msra.mxu0 0.0
        %474 = vmatprep.subr.mxu0 0.0
        %475 = vmatpush1.msra.mxu0 0.0
        %476 = vmatprep.subr.mxu0 0.0
        %477 = vmatpush1.msra.mxu0 0.0
        %478 = vmatprep.subr.mxu0 0.0
        %479 = vmatpush1.msra.mxu0 0.0
        %480 = vmatprep.subr.mxu0 0.0
        %481 = vmatpush1.msra.mxu0 0.0
        %482 = vmatprep.subr.mxu0 0.0
        %483 = vmatpush1.msra.mxu0 0.0
        %484 = vmatprep.subr.mxu0 0.0
        %485 = vmatpush1.msra.mxu0 0.0
        %486 = vmatprep.subr.mxu0 0.0
        %487 = vmatpush1.msra.mxu0 0.0
        %488 = vmatprep.subr.mxu0 0.0
        %489 = vmatpush1.msra.mxu0 0.0
        %490 = vmatprep.subr.mxu0 0.0
        %491 = vmatpush1.msra.mxu0 0.0
        %492 = vmatprep.subr.mxu0 0.0
        %493 = vmatpush1.msra.mxu0 0.0
        %494 = vmatprep.subr.mxu0 0.0
        %495 = vmatpush1.msra.mxu0 0.0
        %496 = vmatprep.subr.mxu0 0.0
        %497 = vmatpush1.msra.mxu0 0.0
        %498 = vmatprep.subr.mxu0 0.0
        %499 = vmatpush1.msra.mxu0 0.0
        %500 = vmatprep.subr.mxu0 0.0
        %501 = vmatpush1.msra.mxu0 0.0
        %502 = vmatprep.subr.mxu0 0.0
        %503 = vmatpush1.msra.mxu0 0.0
        %504 = vmatprep.subr.mxu0 0.0
        %505 = vmatpush1.msra.mxu0 0.0
        %506 = vmatprep.subr.mxu0 0.0
        %507 = vmatpush1.msra.mxu0 0.0
        %508 = vmatprep.subr.mxu0 0.0
        %509 = vmatpush1.msra.mxu0 0.0
        %510 = vmatprep.mubr.f32.mxu0 0.0
        %511 = vmatmul.mubr.f32.gmra.mrb[0].mxu0 %v357
        %v512 = vpop.f32.mrb[0].mxu0
        %v513 = vadd.f32 %v341, %v512
        %v514 = vpop.f32.mrb[0].mxu0
        %v515 = vadd.f32 %v345, %v514
        %516 = vdwg.mxu0
        %517 = vmatprep.subr.mxu0 0.0
        %518 = vmatpush1.msra.mxu0 %v302
        %519 = vmatprep.subr.mxu0 0.0
        %520 = vmatpush1.msra.mxu0 %v307
        %521 = vmatprep.subr.mxu0 0.0
        %522 = vmatpush1.msra.mxu0 %v312
        %523 = vmatprep.subr.mxu0 0.0
        %524 = vmatpush1.msra.mxu0 %v317
        %525 = vmatprep.subr.mxu0 0.0
        %526 = vmatpush1.msra.mxu0 %v322
        %527 = vmatprep.subr.mxu0 0.0
        %528 = vmatpush1.msra.mxu0 %v373
        %529 = vmatprep.subr.mxu0 0.0
        %530 = vmatpush1.msra.mxu0 0.0
        %531 = vmatprep.subr.mxu0 0.0
        %532 = vmatpush1.msra.mxu0 0.0
        %533 = vmatprep.subr.mxu0 0.0
        %534 = vmatpush1.msra.mxu0 0.0
        %535 = vmatprep.subr.mxu0 0.0
        %536 = vmatpush1.msra.mxu0 0.0
        %537 = vmatprep.subr.mxu0 0.0
        %538 = vmatpush1.msra.mxu0 0.0
        %539 = vmatprep.subr.mxu0 0.0
        %540 = vmatpush1.msra.mxu0 0.0
        %541 = vmatprep.subr.mxu0 0.0
        %542 = vmatpush1.msra.mxu0 0.0
        %543 = vmatprep.subr.mxu0 0.0
        %544 = vmatpush1.msra.mxu0 0.0
        %545 = vmatprep.subr.mxu0 0.0
        %546 = vmatpush1.msra.mxu0 0.0
        %547 = vmatprep.subr.mxu0 0.0
        %548 = vmatpush1.msra.mxu0 0.0
        %549 = vmatprep.subr.mxu0 0.0
        %550 = vmatpush1.msra.mxu0 0.0
        %551 = vmatprep.subr.mxu0 0.0
        %552 = vmatpush1.msra.mxu0 0.0
        %553 = vmatprep.subr.mxu0 0.0
        %554 = vmatpush1.msra.mxu0 0.0
        %555 = vmatprep.subr.mxu0 0.0
        %556 = vmatpush1.msra.mxu0 0.0
        %557 = vmatprep.subr.mxu0 0.0
        %558 = vmatpush1.msra.mxu0 0.0
        %559 = vmatprep.subr.mxu0 0.0
        %560 = vmatpush1.msra.mxu0 0.0
        %561 = vmatprep.subr.mxu0 0.0
        %562 = vmatpush1.msra.mxu0 0.0
        %563 = vmatprep.subr.mxu0 0.0
        %564 = vmatpush1.msra.mxu0 0.0
        %565 = vmatprep.subr.mxu0 0.0
        %566 = vmatpush1.msra.mxu0 0.0
        %567 = vmatprep.subr.mxu0 0.0
        %568 = vmatpush1.msra.mxu0 0.0
        %569 = vmatprep.subr.mxu0 0.0
        %570 = vmatpush1.msra.mxu0 0.0
        %571 = vmatprep.subr.mxu0 0.0
        %572 = vmatpush1.msra.mxu0 0.0
        %573 = vmatprep.subr.mxu0 0.0
        %574 = vmatpush1.msra.mxu0 0.0
        %575 = vmatprep.subr.mxu0 0.0
        %576 = vmatpush1.msra.mxu0 0.0
        %577 = vmatprep.subr.mxu0 0.0
        %578 = vmatpush1.msra.mxu0 0.0
        %579 = vmatprep.subr.mxu0 0.0
        %580 = vmatpush1.msra.mxu0 0.0
        %581 = vmatprep.mubr.f32.mxu0 0.0
        %582 = vmatmul.mubr.f32.gmra.mrb[0].mxu0 %v357
        %v583 = vpop.f32.mrb[0].mxu0
        %v584 = vadd.f32 %v349, %v583
        %v585 = vpop.f32.mrb[0].mxu0
        %586 = vdwg.mxu0
        %v592 = vcombine.low %v442, %v444
        %v593 = vcombine.high %v442, %v444
        %v594 = vcombine.low %v513, %v515
        %v595 = vcombine.high %v513, %v515
        %v596 = vcombine.high %v584, %v584
        %v598 = vunpack.c.l.s4 1966171168
        %v599 = vunpack.c.0.s8 %v598
        %v600 = vlaneseq
        %v601 = vshrl.u32 %v600, 7
        %v602 = vsub.s32 %v599, %v601
        %v603 = vrot.slane %v592, %v602
        %v605 = vunpack.c.l.s4 1966171168
        %v606 = vunpack.c.0.s8 %v605
        %v607 = vlaneseq
        %v608 = vshrl.u32 %v607, 7
        %v609 = vsub.s32 %v606, %v608
        %v610 = vrot.slane %v593, %v609
        %v612 = vunpack.c.l.s4 1966171168
        %v613 = vunpack.c.0.s8 %v612
        %v614 = vlaneseq
        %v615 = vshrl.u32 %v614, 7
        %v616 = vsub.s32 %v613, %v615
        %v617 = vrot.slane %v594, %v616
        %v619 = vunpack.c.l.s4 1966171168
        %v620 = vunpack.c.0.s8 %v619
        %v621 = vlaneseq
        %v622 = vshrl.u32 %v621, 7
        %v623 = vsub.s32 %v620, %v622
        %v624 = vrot.slane %v595, %v623
        %v626 = vunpack.c.l.s4 1966171168
        %v627 = vunpack.c.0.s8 %v626
        %v628 = vlaneseq
        %v629 = vshrl.u32 %v628, 7
        %v630 = vsub.s32 %v627, %v629
        %v631 = vrot.slane %v584, %v630
        %v633 = vunpack.c.l.s4 1966171168
        %v634 = vunpack.c.0.s8 %v633
        %v635 = vlaneseq
        %v636 = vshrl.u32 %v635, 7
        %v637 = vsub.s32 %v634, %v636
        %v638 = vrot.slane %v596, %v637
        %v639 = vcombine.low %v603, %v617
        %v640 = vcombine.high %v603, %v617
        %v641 = vcombine.low %v610, %v624
        %v642 = vcombine.high %v610, %v624
        %v643 = vcombine.high %v631, %v631
        %v644 = vcombine.high %v638, %v638
        %v646 = vunpack.c.l.s4 1966171168
        %v647 = vunpack.c.0.s8 %v646
        %v648 = vlaneseq
        %v649 = vshrl.u32 %v648, 7
        %v650 = vsub.s32 %v647, %v649
        %v651 = vrot.slane %v639, %v650
        %v653 = vunpack.c.l.s4 1966171168
        %v654 = vunpack.c.0.s8 %v653
        %v655 = vlaneseq
        %v656 = vshrl.u32 %v655, 7
        %v657 = vsub.s32 %v654, %v656
        %v658 = vrot.slane %v641, %v657
        %v660 = vunpack.c.l.s4 1966171168
        %v661 = vunpack.c.0.s8 %v660
        %v662 = vlaneseq
        %v663 = vshrl.u32 %v662, 7
        %v664 = vsub.s32 %v661, %v663
        %v665 = vrot.slane %v640, %v664
        %v667 = vunpack.c.l.s4 1966171168
        %v668 = vunpack.c.0.s8 %v667
        %v669 = vlaneseq
        %v670 = vshrl.u32 %v669, 7
        %v671 = vsub.s32 %v668, %v670
        %v672 = vrot.slane %v642, %v671
        %v674 = vunpack.c.l.s4 1966171168
        %v675 = vunpack.c.0.s8 %v674
        %v676 = vlaneseq
        %v677 = vshrl.u32 %v676, 7
        %v678 = vsub.s32 %v675, %v677
        %v679 = vrot.slane %v631, %v678
        %v681 = vunpack.c.l.s4 1966171168
        %v682 = vunpack.c.0.s8 %v681
        %v683 = vlaneseq
        %v684 = vshrl.u32 %v683, 7
        %v685 = vsub.s32 %v682, %v684
        %v686 = vrot.slane %v638, %v685
        %v688 = vunpack.c.l.s4 1966171168
        %v689 = vunpack.c.0.s8 %v688
        %v690 = vlaneseq
        %v691 = vshrl.u32 %v690, 7
        %v692 = vsub.s32 %v689, %v691
        %v693 = vrot.slane %v643, %v692
        %v695 = vunpack.c.l.s4 1966171168
        %v696 = vunpack.c.0.s8 %v695
        %v697 = vlaneseq
        %v698 = vshrl.u32 %v697, 7
        %v699 = vsub.s32 %v696, %v698
        %v700 = vrot.slane %v644, %v699
        %v701 = vcombine.low %v651, %v679
        %v702 = vcombine.high %v651, %v679
        %v703 = vcombine.low %v658, %v686
        %v704 = vcombine.high %v658, %v686
        %v705 = vcombine.low %v665, %v693
        %v706 = vcombine.high %v665, %v693
        %v707 = vcombine.low %v672, %v700
        %v708 = vcombine.high %v672, %v700
        %v717 = vlaneseq
        %vm718 = vcmp.ge.s32.totalorder %v717, 0
        %vm719 = vcmp.lt.s32.totalorder %v717, 640
        %vm720 = vmand %vm718, %vm719
        %721 = vst.msk [vmem:[%s275] sm:$0x1f] %vm720, %v701
        %722 = vst.msk [vmem:[%s275 + $0x5] sm:$0x1f] %vm720, %v705
        %723 = vst.msk [vmem:[%s275 + $0xa] sm:$0x1f] %vm720, %v702
        %724 = vst.msk [vmem:[%s275 + $0xf] sm:$0x1f] %vm720, %v706
        %725 = vst.msk [vmem:[%s275 + $0x14] sm:$0x1f] %vm720, %v703
        %726 = vst.msk [vmem:[%s275 + $0x19] sm:$0x1f] %vm720, %v707
        %727 = vst.msk [vmem:[%s275 + $0x1e] sm:$0x1f] %vm720, %v704
        %728 = vst.msk [vmem:[%s275 + $0x23] sm:$0x1f] %vm720, %v708
        %s729 = sand.u32 %s121, 1
        %s730 = scalar_lea.sflag [#allocation4], %s729
        %s731 = sand.u32 %s121, 1
        %s732 = smul.addr %s731, 40
        %s733 = scalar_lea.vmem [#allocation8], %s732
        // Predicated region
        $region45: #{tpu_custom_call.1} parent=31 // pred_check
          %p734 = pneg %p131
        $region46: #{tpu_custom_call.1} parent=31 // pred_check_branch
          %736 = sbr.rel (%p734) target = $region48
        $region47: #{tpu_custom_call.1} parent=31 // pred_region
          %s737 = smul.u32 8, %s25
          %s738 = smul.u32 5, %s26
          %s739 = ssub.s32 1, %s737
          %s740 = smul.u32 16, %s739
          %s741 = ssub.s32 9, %s738
          %p742 = scmp.lt.s32.totalorder %s741, 5
          %s743 = scalar_select %p742, %s741, 5
          %s744 = smul.u32 %s740, %s743
          %s746 = ssub.s32 640, %s744
          %747 = vsyncadd %s730, %s746
          %p748 = scmp.ne.s32.totalorder 0, %s744
          %s749 = smul.addr %s737, 9
          %s750 = sadd.s32 %s738, %s749
          %s751 = smul.addr %s750, 16
          %s752 = scalar_lea.hbm %s3, %s751
          %s753 = smul.u32 %s743, %s739
          %s754 = sshll.u32 %s733, 4
          %s755 = int_to_ptr.vmem [resolvable:$true] %s754
          %s756 = sshll.u32 %s753, 4
          %760 = dma.vmem_to_hbm [thread:$0]  (%p748), %s755, %s756, %s752, %s730, 80, 144, %s743
        $region48: #{tpu_custom_call.1} parent=31 // pred_fallthru
          _
      $region32: #{tpu_custom_call.1} parent=5 // pred_fallthru
        _
      %p761 = scmp.le.s32.totalorder 2, %s16
      // Predicated region
      $region49: #{tpu_custom_call.1} parent=5 // pred_check
        %p762 = pneg %p761
      $region50: #{tpu_custom_call.1} parent=5 // pred_check_branch
        %764 = sbr.rel (%p762) target = $region52
      $region51: #{tpu_custom_call.1} parent=5 // pred_region
        %s765 = ssub.s32 %s16, 2
        // Predicated region
        $region53: #{tpu_custom_call.1} parent=51 // pred_check
          %p766 = pneg %p137
        $region54: #{tpu_custom_call.1} parent=51 // pred_check_branch
          %768 = sbr.rel (%p766) target = $region56
        $region55: #{tpu_custom_call.1} parent=51 // pred_region
          %s769 = sand.u32 %s122, 1
          %s770 = scalar_lea.sflag [#allocation4], %s769
          %s771 = sand.u32 %s122, 1
          %s772 = smul.addr %s771, 40
          %s773 = scalar_lea.vmem [#allocation8], %s772
          %774 = dma.done %s770, 640
        $region56: #{tpu_custom_call.1} parent=51 // pred_fallthru
          _
      $region52: #{tpu_custom_call.1} parent=5 // pred_fallthru
        _
    $region6: #{tpu_custom_call.1} parent=1 // loop_footer
      %s20 = sadd.s32 1, %s16
    $region7: #{tpu_custom_call.1} parent=1 // loop_footer_branch
      %15 = sbr.rel target = $region3
    $region8: #{tpu_custom_call.1} parent=1 // loop_exit
      _
    %775 = vsyncpa [#allocation3], 1
    %s776 = scalar_lea.sflag [#allocation3], 1
    %777 = vsyncpa %s776, 1
    %778 = vsyncpa [#allocation6], 1
    %s779 = scalar_lea.sflag [#allocation6], 1
    %780 = vsyncpa %s779, 1
    %781 = vsyncpa [#allocation4], 1
    %s782 = scalar_lea.sflag [#allocation4], 1
    %783 = vsyncpa %s782, 1

</llo_original>
